<compile_context>
chip_gen: v7x
topology: tpu7x:2x2x1
jax: 0.10.0
libtpu: 0.0.40
codegen_flags: <defaults>
</compile_context>

<pallas_src>
import math

import jax
import jax.numpy as jnp
from jax import lax
from jax.experimental import pallas as pl
from jax.experimental.pallas import tpu as pltpu

LIP_C = math.sqrt(2.0)  # self.lipC in the PyTorch module; never applied to outputs.


def _pool_kernel(x_ref, o_ref, carry_ref):
    """One grid step: R output rows x one N*C chunk.

    x_ref     : (R, 2, 2, w2, ncc)  [out-row, row-in-pair, col-in-pair, w2, N*C]
    o_ref     : (2, R, w2, ncc)     [0 = pool1 (a), 1 = pool2 sliced (b)]
    carry_ref : (1, w2, ncc)        shifted horizontal max of the last input row
                                    of the previous row-block (carried in VMEM)
    """
    rows, _, _, w2, ncc = x_ref.shape
    dt = o_ref.dtype

    @pl.when(pl.program_id(1) == 0)
    def _init():
        carry_ref[...] = jnp.full((1, w2, ncc), -jnp.inf, dtype=dt)

    even = x_ref[:, :, 0]                      # cols 2j      -> (R, 2, w2, ncc)
    odd = x_ref[:, :, 1]                       # cols 2j + 1  -> (R, 2, w2, ncc)

    # ---- pool1 (a): window rows {2i, 2i+1} x cols {2j, 2j+1} ----------------
    h_a = jnp.maximum(even, odd)               # horizontal max per input row
    o_ref[0] = jnp.maximum(h_a[:, 0], h_a[:, 1])

    # ---- pool2 (b): window rows {2i-1, 2i} x cols {2j-1, 2j}, -inf outside --
    # horizontal: h_b[r, j] = max(x[r, 2j-1], x[r, 2j]) = max(odd[r, j-1], even[r, j])
    pad_col = jnp.full((rows, 2, 1, ncc), -jnp.inf, dtype=dt)
    if w2 > 1:
        odd_prev = jnp.concatenate([pad_col, odd[:, :, :-1]], axis=2)
    else:
        odd_prev = pad_col
    h_b = jnp.maximum(odd_prev, even)          # (R, 2, w2, ncc)

    # vertical: b[i] = max(h_b[row 2i-1], h_b[row 2i]); row 2i-1 is the odd row
    # of the previous output row (carried across rows and grid steps).
    h_b_even = h_b[:, 0]                       # rows 2i      -> (R, w2, ncc)
    h_b_odd = h_b[:, 1]                        # rows 2i + 1  -> (R, w2, ncc)
    if rows > 1:
        prev = jnp.concatenate([carry_ref[...], h_b_odd[:-1]], axis=0)
    else:
        prev = carry_ref[...]
    o_ref[1] = jnp.maximum(prev, h_b_even)
    carry_ref[...] = h_b_odd[rows - 1:]


def _pick_tiles(h2, w2, nc, itemsize, target_bytes=2 * 1024 * 1024):
    """Choose (nc_chunk, rows_per_step)."""
    # Lane-axis chunking: only split N*C when the chunks stay lane-dense
    # (multiples of 128) and divide N*C. Gives v7x's 2 TensorCores a parallel
    # grid axis and caps per-core VMEM (v7x has 64 MiB vs 128 MiB on v5e/v6e).
    ncc = nc
    if nc % 256 == 0:
        ncc = nc // 2
        while ncc % 256 == 0 and ncc > 1024:
            ncc //= 2
    # Rows per grid step: largest divisor of h2 keeping the input tile under
    # ~target_bytes (per-step overhead ~0.35 us: too-small tiles are overhead
    # bound; too-big tiles pressure the scoped VMEM default).
    row_bytes = 4 * w2 * ncc * itemsize
    r = int(max(1, min(h2, target_bytes // max(1, row_bytes))))
    while h2 % r:
        r -= 1
    return ncc, r


@jax.jit
def pooling_shortcut(x):
    """JAX/Pallas equivalent of PoolingShortcut.forward.  x: (N, C, H, W)."""
    N, C, H, W = x.shape
    if W <= 1:
        # else-branch of the PyTorch forward (static shape check): a = b = x
        return jnp.concatenate([x, x], axis=1)

    h2, w2 = H // 2, W // 2
    nc = N * C

    # Single input relayout pass:
    #   (N, C, H, W) -> (h2, 2, 2, w2, N*C)
    #   axes: [out-row, row-in-pair, col-in-pair, w2 (sublanes), N*C (lanes)]
    x6 = x[:, :, : 2 * h2, : 2 * w2].reshape(N, C, h2, 2, w2, 2)
    x6 = jnp.transpose(x6, (2, 3, 5, 4, 0, 1)).reshape(h2, 2, 2, w2, nc)

    ncc, rows = _pick_tiles(h2, w2, nc, jnp.dtype(x.dtype).itemsize)
    grid = (nc // ncc, h2 // rows)

    out = pl.pallas_call(
        _pool_kernel,
        out_shape=jax.ShapeDtypeStruct((2, h2, w2, nc), x.dtype),
        grid_spec=pltpu.PrefetchScalarGridSpec(
            num_scalar_prefetch=0,
            grid=grid,
            in_specs=[
                pl.BlockSpec((rows, 2, 2, w2, ncc), lambda c, i: (i, 0, 0, 0, c))
            ],
            out_specs=pl.BlockSpec((2, rows, w2, ncc), lambda c, i: (0, i, 0, c)),
            scratch_shapes=[pltpu.VMEM((1, w2, ncc), x.dtype)],
        ),
        compiler_params=pltpu.CompilerParams(
            # N*C-chunk axis is parallel (megacore on v7x); the row axis carries
            # the previous row's shifted max in scratch, so it stays sequential.
            dimension_semantics=("parallel", "arbitrary"),
            vmem_limit_bytes=48 * 1024 * 1024,  # headroom; <= v7x's 64 MiB VMEM
        ),
    )(x6)

    # Single output relayout pass:
    #   (2, h2, w2, N, C) -> (N, 2, C, h2, w2) -> (N, 2*C, h2, w2)
    # which is exactly torch.cat((a, b), dim=1) in NCHW.
    out = out.reshape(2, h2, w2, N, C)
    out = jnp.transpose(out, (3, 0, 4, 1, 2)).reshape(N, 2 * C, h2, w2)
    return out


def _reference(x):
    """Pure-JAX reference mirroring the PyTorch forward exactly."""
    N, C, H, W = x.shape
    if W <= 1:
        return jnp.concatenate([x, x], axis=1)
    h2, w2 = H // 2, W // 2
    a = lax.reduce_window(x, -jnp.inf, lax.max, (1, 1, 2, 2), (1, 1, 2, 2), "VALID")
    b = lax.reduce_window(
        x, -jnp.inf, lax.max, (1, 1, 2, 2), (1, 1, 2, 2),
        ((0, 0), (0, 0), (1, 1), (1, 1)),
    )[:, :, :h2, :w2]
    return jnp.concatenate([a, b], axis=1)


if __name__ == "__main__":
    key = jax.random.PRNGKey(0)
    k0, k1, k2 = jax.random.split(key, 3)

    # Main case: N=2, C=4, H=W=16 -> output (2, 8, 8, 8).
    x = jax.random.normal(k0, (2, 4, 16, 16), dtype=jnp.float32)
    out = jax.block_until_ready(pooling_shortcut(x))
    assert out.shape == (2, 8, 8, 8), out.shape
    assert jnp.allclose(out, _reference(x)), "mismatch on (2,4,16,16)"

    # Odd spatial dims (exercises the floor-crop / padded-pool edge handling).
    x2 = jax.random.normal(k1, (1, 3, 9, 11), dtype=jnp.float32)
    out2 = jax.block_until_ready(pooling_shortcut(x2))
    assert jnp.allclose(out2, _reference(x2)), "mismatch on (1,3,9,11)"

    # W <= 1 branch (pure passthrough concat, no kernel).
    x3 = jax.random.normal(k2, (2, 4, 6, 1), dtype=jnp.float32)
    out3 = jax.block_until_ready(pooling_shortcut(x3))
    assert jnp.allclose(out3, _reference(x3)), "mismatch on (2,4,6,1)"

    print("KERNEL_OK")
</pallas_src>

<mosaic_0001>
module attributes {stable_mosaic.version = 11 : i64} {
  func.func @_pool_kernel(%arg0: i32, %arg1: i32, %arg2: memref<8x2x2x8x8xf32, #tpu.memory_space<vmem>>, %arg3: memref<2x8x8x8xf32, #tpu.memory_space<vmem>>, %arg4: memref<1x8x8xf32, #tpu.memory_space<vmem>>) attributes {dimension_semantics = [#tpu.dimension_semantics<parallel>, #tpu.dimension_semantics<arbitrary>], iteration_bounds = array<i64: 1, 1>, scalar_prefetch = 0 : i64, scratch_operands = 1 : i64, tpu.core_type = #tpu.core_type<tc>, window_params = [{transform_indices = @transform_0, window_bounds = array<i64: 8, 2, 2, 8, 8>}, {transform_indices = @transform_1, window_bounds = array<i64: 2, 8, 8, 8>}]} {
    %c0_i32 = arith.constant 0 : i32
    %0 = arith.cmpi eq, %arg1, %c0_i32 : i32
    %1 = arith.extui %0 : i1 to i32
    %c0_i32_0 = arith.constant 0 : i32
    %2 = arith.cmpi ne, %1, %c0_i32_0 : i32
    scf.if %2 {
      %cst_23 = arith.constant 0xFF800000 : f32
      %33 = vector.broadcast %cst_23 : f32 to vector<1x8x8xf32>
      %c0_24 = arith.constant 0 : index
      %c0_25 = arith.constant 0 : index
      %c0_26 = arith.constant 0 : index
      %34 = vector.load %arg4[%c0_24, %c0_25, %c0_26] : memref<1x8x8xf32, #tpu.memory_space<vmem>>, vector<1x8x8xf32>
      tpu.vector_store %arg4[%c0_24, %c0_25, %c0_26], %33 {strides = array<i32>} : memref<1x8x8xf32, #tpu.memory_space<vmem>>, vector<1x8x8xf32>,
    } else {
    }
    %c0 = arith.constant 0 : index
    %c0_1 = arith.constant 0 : index
    %c0_2 = arith.constant 0 : index
    %c0_3 = arith.constant 0 : index
    %c0_4 = arith.constant 0 : index
    %3 = vector.load %arg2[%c0, %c0_1, %c0_2, %c0_3, %c0_4] : memref<8x2x2x8x8xf32, #tpu.memory_space<vmem>>, vector<8x2x1x8x8xf32>
    %4 = vector.shape_cast %3 : vector<8x2x1x8x8xf32> to vector<8x2x8x8xf32>
    %c0_5 = arith.constant 0 : index
    %c0_6 = arith.constant 0 : index
    %c1 = arith.constant 1 : index
    %c0_7 = arith.constant 0 : index
    %c0_8 = arith.constant 0 : index
    %5 = vector.load %arg2[%c0_5, %c0_6, %c1, %c0_7, %c0_8] : memref<8x2x2x8x8xf32, #tpu.memory_space<vmem>>, vector<8x2x1x8x8xf32>
    %6 = vector.shape_cast %5 : vector<8x2x1x8x8xf32> to vector<8x2x8x8xf32>
    %7 = arith.maximumf %4, %6 : vector<8x2x8x8xf32>
    %8 = vector.extract_strided_slice %7 {offsets = [0, 0, 0, 0], sizes = [8, 1, 8, 8], strides = [1, 1, 1, 1]} : vector<8x2x8x8xf32> to vector<8x1x8x8xf32>
    %9 = vector.shape_cast %8 : vector<8x1x8x8xf32> to vector<8x8x8xf32>
    %10 = vector.extract_strided_slice %7 {offsets = [0, 1, 0, 0], sizes = [8, 1, 8, 8], strides = [1, 1, 1, 1]} : vector<8x2x8x8xf32> to vector<8x1x8x8xf32>
    %11 = vector.shape_cast %10 : vector<8x1x8x8xf32> to vector<8x8x8xf32>
    %12 = arith.maximumf %9, %11 : vector<8x8x8xf32>
    %c0_9 = arith.constant 0 : index
    %c0_10 = arith.constant 0 : index
    %c0_11 = arith.constant 0 : index
    %c0_12 = arith.constant 0 : index
    %13 = vector.load %arg3[%c0_9, %c0_10, %c0_11, %c0_12] : memref<2x8x8x8xf32, #tpu.memory_space<vmem>>, vector<1x8x8x8xf32>
    %14 = vector.shape_cast %13 : vector<1x8x8x8xf32> to vector<8x8x8xf32>
    %15 = vector.shape_cast %12 : vector<8x8x8xf32> to vector<1x8x8x8xf32>
    tpu.vector_store %arg3[%c0_9, %c0_10, %c0_11, %c0_12], %15 {strides = array<i32>} : memref<2x8x8x8xf32, #tpu.memory_space<vmem>>, vector<1x8x8x8xf32>,
    %cst = arith.constant 0xFF800000 : f32
    %16 = vector.broadcast %cst : f32 to vector<8x2x1x8xf32>
    %17 = vector.extract_strided_slice %6 {offsets = [0, 0, 0, 0], sizes = [8, 2, 7, 8], strides = [1, 1, 1, 1]} : vector<8x2x8x8xf32> to vector<8x2x7x8xf32>
    %18 = tpu.concatenate %16, %17 in 2 : vector<8x2x1x8xf32>, vector<8x2x7x8xf32> -> vector<8x2x8x8xf32>
    %19 = arith.maximumf %18, %4 : vector<8x2x8x8xf32>
    %20 = vector.extract_strided_slice %19 {offsets = [0, 0, 0, 0], sizes = [8, 1, 8, 8], strides = [1, 1, 1, 1]} : vector<8x2x8x8xf32> to vector<8x1x8x8xf32>
    %21 = vector.shape_cast %20 : vector<8x1x8x8xf32> to vector<8x8x8xf32>
    %22 = vector.extract_strided_slice %19 {offsets = [0, 1, 0, 0], sizes = [8, 1, 8, 8], strides = [1, 1, 1, 1]} : vector<8x2x8x8xf32> to vector<8x1x8x8xf32>
    %23 = vector.shape_cast %22 : vector<8x1x8x8xf32> to vector<8x8x8xf32>
    %c0_13 = arith.constant 0 : index
    %c0_14 = arith.constant 0 : index
    %c0_15 = arith.constant 0 : index
    %24 = vector.load %arg4[%c0_13, %c0_14, %c0_15] : memref<1x8x8xf32, #tpu.memory_space<vmem>>, vector<1x8x8xf32>
    %25 = vector.extract_strided_slice %23 {offsets = [0, 0, 0], sizes = [7, 8, 8], strides = [1, 1, 1]} : vector<8x8x8xf32> to vector<7x8x8xf32>
    %26 = tpu.concatenate %24, %25 in 0 : vector<1x8x8xf32>, vector<7x8x8xf32> -> vector<8x8x8xf32>
    %27 = arith.maximumf %26, %21 : vector<8x8x8xf32>
    %c1_16 = arith.constant 1 : index
    %c0_17 = arith.constant 0 : index
    %c0_18 = arith.constant 0 : index
    %c0_19 = arith.constant 0 : index
    %28 = vector.load %arg3[%c1_16, %c0_17, %c0_18, %c0_19] : memref<2x8x8x8xf32, #tpu.memory_space<vmem>>, vector<1x8x8x8xf32>
    %29 = vector.shape_cast %28 : vector<1x8x8x8xf32> to vector<8x8x8xf32>
    %30 = vector.shape_cast %27 : vector<8x8x8xf32> to vector<1x8x8x8xf32>
    tpu.vector_store %arg3[%c1_16, %c0_17, %c0_18, %c0_19], %30 {strides = array<i32>} : memref<2x8x8x8xf32, #tpu.memory_space<vmem>>, vector<1x8x8x8xf32>,
    %31 = vector.extract_strided_slice %23 {offsets = [7, 0, 0], sizes = [1, 8, 8], strides = [1, 1, 1]} : vector<8x8x8xf32> to vector<1x8x8xf32>
    %c0_20 = arith.constant 0 : index
    %c0_21 = arith.constant 0 : index
    %c0_22 = arith.constant 0 : index
    %32 = vector.load %arg4[%c0_20, %c0_21, %c0_22] : memref<1x8x8xf32, #tpu.memory_space<vmem>>, vector<1x8x8xf32>
    tpu.vector_store %arg4[%c0_20, %c0_21, %c0_22], %31 {strides = array<i32>} : memref<1x8x8xf32, #tpu.memory_space<vmem>>, vector<1x8x8xf32>,
    return
  }
  func.func @transform_0(%arg0: i32, %arg1: i32) -> (i32, i32, i32, i32, i32) {
    %c0_i32 = arith.constant 0 : i32
    %c0_i32_0 = arith.constant 0 : i32
    %c0_i32_1 = arith.constant 0 : i32
    %c0_i32_2 = arith.constant 0 : i32
    return %arg1, %c0_i32, %c0_i32_0, %c0_i32_1, %arg0 : i32, i32, i32, i32, i32
  }
  func.func @transform_1(%arg0: i32, %arg1: i32) -> (i32, i32, i32, i32) {
    %c0_i32 = arith.constant 0 : i32
    %c0_i32_0 = arith.constant 0 : i32
    %c0_i32_1 = arith.constant 0 : i32
    return %c0_i32, %arg1, %c0_i32_0, %arg0 : i32, i32, i32, i32
  }
}

</mosaic_0001>

<llo_original>
// kernel: pooling_shortcut.1
$region0: #{pooling_shortcut.1}
  #allocation0 [shape = 'u32[]', space=smem, size = 0x4, offset = 0x4, fixed_abs, tag = 'smem constant byte address 0x4 - core index']
  #allocation1 [shape = 'u32[144,128]{1,0:T(1,128)}', space=vmem, size = 0x12000, scoped, tag = 'internal scratch']
  #allocation2 [shape = 'f32[1,8,8]{2,1,0:T(8,128)}', space=vmem, size = 0x1000, scoped, tag = 'scratch operand']
  %s0 = inlined_call_operand.vmem [shape: f32[8,2,2,8,8], index: 0, kind: input, shape index: {}]
  %s1 = inlined_call_operand.vmem [shape: f32[2,8,8,8], index: 1, kind: output, shape index: {}]
  %s2 = sld [smem:[#allocation0]]
  $region18: #{pooling_shortcut.1} parent=0
    _
  %s4 = ssub.s32 1, %s2
  %s5 = scalar_select 0, %s4, %s2
  // Predicated region
  $region2: #{pooling_shortcut.1} parent=0 // pred_check
    _
  $region3: #{pooling_shortcut.1} parent=0 // pred_check_branch
    %7 = sbr.rel (0) target = $region5
  $region4: #{pooling_shortcut.1} parent=0 // pred_region
    _
  $region5: #{pooling_shortcut.1} parent=0 // pred_fallthru
    _
  %p8 = scmp.eq.s32.totalorder 0, 0
  // Predicated region
  $region6: #{pooling_shortcut.1} parent=0 // pred_check
    %p9 = pneg %p8
  $region7: #{pooling_shortcut.1} parent=0 // pred_check_branch
    %11 = sbr.rel (%p9) target = $region9
  $region8: #{pooling_shortcut.1} parent=0 // pred_region
    %vm12 = vcmask 64512
    %13 = vst.msk [vmem:[#allocation2] sm:$0xff] %vm12, -inf
  $region9: #{pooling_shortcut.1} parent=0 // pred_fallthru
    _
  %v14 = vld [vmem:[%s0] sm:$0xff]
  %v15 = vld [vmem:[%s0 + $0x10] sm:$0xff]
  %v16 = vld [vmem:[%s0 + $0x20] sm:$0xff]
  %v17 = vld [vmem:[%s0 + $0x30] sm:$0xff]
  %v18 = vld [vmem:[%s0 + $0x40] sm:$0xff]
  %v19 = vld [vmem:[%s0 + $0x50] sm:$0xff]
  %v20 = vld [vmem:[%s0 + $0x60] sm:$0xff]
  %v21 = vld [vmem:[%s0 + $0x70] sm:$0xff]
  %v22 = vld [vmem:[%s0 + $0x80] sm:$0xff]
  %v23 = vld [vmem:[%s0 + $0x90] sm:$0xff]
  %v24 = vld [vmem:[%s0 + $0xa0] sm:$0xff]
  %v25 = vld [vmem:[%s0 + $0xb0] sm:$0xff]
  %v26 = vld [vmem:[%s0 + $0xc0] sm:$0xff]
  %v27 = vld [vmem:[%s0 + $0xd0] sm:$0xff]
  %v28 = vld [vmem:[%s0 + $0xe0] sm:$0xff]
  %v29 = vld [vmem:[%s0 + $0xf0] sm:$0xff]
  %s30 = scalar_lea.vmem %s0, 8
  %v31 = vld [vmem:[%s30] sm:$0xff]
  %v32 = vld [vmem:[%s30 + $0x10] sm:$0xff]
  %v33 = vld [vmem:[%s30 + $0x20] sm:$0xff]
  %v34 = vld [vmem:[%s30 + $0x30] sm:$0xff]
  %v35 = vld [vmem:[%s30 + $0x40] sm:$0xff]
  %v36 = vld [vmem:[%s30 + $0x50] sm:$0xff]
  %v37 = vld [vmem:[%s30 + $0x60] sm:$0xff]
  %v38 = vld [vmem:[%s30 + $0x70] sm:$0xff]
  %v39 = vld [vmem:[%s30 + $0x80] sm:$0xff]
  %v40 = vld [vmem:[%s30 + $0x90] sm:$0xff]
  %v41 = vld [vmem:[%s30 + $0xa0] sm:$0xff]
  %v42 = vld [vmem:[%s30 + $0xb0] sm:$0xff]
  %v43 = vld [vmem:[%s30 + $0xc0] sm:$0xff]
  %v44 = vld [vmem:[%s30 + $0xd0] sm:$0xff]
  %v45 = vld [vmem:[%s30 + $0xe0] sm:$0xff]
  %v46 = vld [vmem:[%s30 + $0xf0] sm:$0xff]
  %v47 = vmax.f32 %v14, %v31
  %v48 = vmax.f32 %v15, %v32
  %v49 = vmax.f32 %v16, %v33
  %v50 = vmax.f32 %v17, %v34
  %v51 = vmax.f32 %v18, %v35
  %v52 = vmax.f32 %v19, %v36
  %v53 = vmax.f32 %v20, %v37
  %v54 = vmax.f32 %v21, %v38
  %v55 = vmax.f32 %v22, %v39
  %v56 = vmax.f32 %v23, %v40
  %v57 = vmax.f32 %v24, %v41
  %v58 = vmax.f32 %v25, %v42
  %v59 = vmax.f32 %v26, %v43
  %v60 = vmax.f32 %v27, %v44
  %v61 = vmax.f32 %v28, %v45
  %v62 = vmax.f32 %v29, %v46
  %v63 = vmax.f32 %v47, %v48
  %v64 = vmax.f32 %v49, %v50
  %v65 = vmax.f32 %v51, %v52
  %v66 = vmax.f32 %v53, %v54
  %v67 = vmax.f32 %v55, %v56
  %v68 = vmax.f32 %v57, %v58
  %v69 = vmax.f32 %v59, %v60
  %v70 = vmax.f32 %v61, %v62
  %vm71 = vcmask 64512
  %72 = vst.msk [vmem:[%s1] sm:$0xff] %vm71, %v63
  %73 = vst.msk [vmem:[%s1 + $0x8] sm:$0xff] %vm71, %v64
  %74 = vst.msk [vmem:[%s1 + $0x10] sm:$0xff] %vm71, %v65
  %75 = vst.msk [vmem:[%s1 + $0x18] sm:$0xff] %vm71, %v66
  %76 = vst.msk [vmem:[%s1 + $0x20] sm:$0xff] %vm71, %v67
  %77 = vst.msk [vmem:[%s1 + $0x28] sm:$0xff] %vm71, %v68
  %78 = vst.msk [vmem:[%s1 + $0x30] sm:$0xff] %vm71, %v69
  %79 = vst.msk [vmem:[%s1 + $0x38] sm:$0xff] %vm71, %v70
  %v96 = vrot.slane %v31, 7
  %v97 = vrot.slane %v32, 7
  %v98 = vrot.slane %v33, 7
  %v99 = vrot.slane %v34, 7
  %v100 = vrot.slane %v35, 7
  %v101 = vrot.slane %v36, 7
  %v102 = vrot.slane %v37, 7
  %v103 = vrot.slane %v38, 7
  %v104 = vrot.slane %v39, 7
  %v105 = vrot.slane %v40, 7
  %v106 = vrot.slane %v41, 7
  %v107 = vrot.slane %v42, 7
  %v108 = vrot.slane %v43, 7
  %v109 = vrot.slane %v44, 7
  %v110 = vrot.slane %v45, 7
  %v111 = vrot.slane %v46, 7
  %vm128 = vcmask 1040384
  %v129 = vsel %vm128, -inf, %v96
  %v130 = vsel %vm128, -inf, %v97
  %v131 = vsel %vm128, -inf, %v98
  %v132 = vsel %vm128, -inf, %v99
  %v133 = vsel %vm128, -inf, %v100
  %v134 = vsel %vm128, -inf, %v101
  %v135 = vsel %vm128, -inf, %v102
  %v136 = vsel %vm128, -inf, %v103
  %v137 = vsel %vm128, -inf, %v104
  %v138 = vsel %vm128, -inf, %v105
  %v139 = vsel %vm128, -inf, %v106
  %v140 = vsel %vm128, -inf, %v107
  %v141 = vsel %vm128, -inf, %v108
  %v142 = vsel %vm128, -inf, %v109
  %v143 = vsel %vm128, -inf, %v110
  %v144 = vsel %vm128, -inf, %v111
  %v145 = vmax.f32 %v129, %v14
  %v146 = vmax.f32 %v130, %v15
  %v147 = vmax.f32 %v131, %v16
  %v148 = vmax.f32 %v132, %v17
  %v149 = vmax.f32 %v133, %v18
  %v150 = vmax.f32 %v134, %v19
  %v151 = vmax.f32 %v135, %v20
  %v152 = vmax.f32 %v136, %v21
  %v153 = vmax.f32 %v137, %v22
  %v154 = vmax.f32 %v138, %v23
  %v155 = vmax.f32 %v139, %v24
  %v156 = vmax.f32 %v140, %v25
  %v157 = vmax.f32 %v141, %v26
  %v158 = vmax.f32 %v142, %v27
  %v159 = vmax.f32 %v143, %v28
  %v160 = vmax.f32 %v144, %v29
  %v161 = vld [vmem:[#allocation2] sm:$0xff]
  %v162 = vmax.f32 %v161, %v145
  %v163 = vmax.f32 %v146, %v147
  %v164 = vmax.f32 %v148, %v149
  %v165 = vmax.f32 %v150, %v151
  %v166 = vmax.f32 %v152, %v153
  %v167 = vmax.f32 %v154, %v155
  %v168 = vmax.f32 %v156, %v157
  %v169 = vmax.f32 %v158, %v159
  %s170 = scalar_lea.vmem %s1, 64
  %171 = vst.msk [vmem:[%s170] sm:$0xff] %vm71, %v162
  %172 = vst.msk [vmem:[%s170 + $0x8] sm:$0xff] %vm71, %v163
  %173 = vst.msk [vmem:[%s170 + $0x10] sm:$0xff] %vm71, %v164
  %174 = vst.msk [vmem:[%s170 + $0x18] sm:$0xff] %vm71, %v165
  %175 = vst.msk [vmem:[%s170 + $0x20] sm:$0xff] %vm71, %v166
  %176 = vst.msk [vmem:[%s170 + $0x28] sm:$0xff] %vm71, %v167
  %177 = vst.msk [vmem:[%s170 + $0x30] sm:$0xff] %vm71, %v168
  %178 = vst.msk [vmem:[%s170 + $0x38] sm:$0xff] %vm71, %v169
  %179 = vst.msk [vmem:[#allocation2] sm:$0xff] %vm71, %v160
  // Predicated region
  $region10: #{pooling_shortcut.1} parent=0 // pred_check
    _
  $region11: #{pooling_shortcut.1} parent=0 // pred_check_branch
    %181 = sbr.rel (0) target = $region13
  $region12: #{pooling_shortcut.1} parent=0 // pred_region
    _
  $region13: #{pooling_shortcut.1} parent=0 // pred_fallthru
    _
  // Predicated region
  $region14: #{pooling_shortcut.1} parent=0 // pred_check
    _
  $region15: #{pooling_shortcut.1} parent=0 // pred_check_branch
    %183 = sbr.rel (0) target = $region17
  $region16: #{pooling_shortcut.1} parent=0 // pred_region
    _
  $region17: #{pooling_shortcut.1} parent=0 // pred_fallthru
    _

</llo_original>
